<compile_context>
chip_gen: v6e
topology: v6e:2x2x1
jax: 0.10.0
libtpu: 0.0.40
codegen_flags: <defaults>
</compile_context>

<pallas_src>
import jax
import jax.numpy as jnp
from jax.experimental import pallas as pl
from jax.experimental.pallas import tpu as pltpu

SEQ = 8        # sequence length
IN_DIM = 16    # input_dim
HID = 32       # hidden_dim (per direction)


def _sigmoid_fast(x):
    # exp on the EUP + approx reciprocal on the EUP: keeps the Newton-refined f32
    # divide off the VPU critical path.
    return pl.reciprocal(1.0 + jnp.exp(-x), approx=True)


def lstm_p_kernel(x2_ref, wih_ref, whh_ref, b_ref, wout_ref, bout_ref, out_ref):
    T = x2_ref.shape[0]
    D2 = whh_ref.shape[0]              # 2 * hidden: fused [fwd | bwd] state width
    G = 4 * D2                         # 8H gate lanes, block order [f, i, o, g]

    # Hoisted input projection for every timestep and both directions in a single
    # MXU call.  x2 row i = [x[i] | x[T-1-i]] and wih is block-diagonal over
    # directions, so pre[i] already pairs forward step i with backward step i
    # (which consumes x[T-1-i]).  (b_ih + b_hh) is folded in here.
    pre = jnp.dot(x2_ref[...], wih_ref[...],
                  preferred_element_type=jnp.float32) + b_ref[...]      # (T, 8H)

    whh = whh_ref[...]                 # (2H, 8H) bf16, block-diagonal over directions

    # Fused fwd/bwd recurrence, fully unrolled. State layout: [h_fwd | h_bwd].
    h = jnp.zeros((1, D2), jnp.float32)
    c = jnp.zeros((1, D2), jnp.float32)
    h_steps = []
    for i in range(T):
        gates = pre[i:i + 1, :] + jnp.dot(h.astype(jnp.bfloat16), whh,
                                          preferred_element_type=jnp.float32)  # (1, 8H)
        # Sigmoid only on the contiguous f/i/o lanes, tanh only on the g lanes.
        sg = _sigmoid_fast(gates[:, :3 * D2])
        f_g = sg[:, :D2]
        i_g = sg[:, D2:2 * D2]
        o_g = sg[:, 2 * D2:3 * D2]
        g_g = jnp.tanh(gates[:, 3 * D2:G])
        c = f_g * c + i_g * g_g
        h = o_g * jnp.tanh(c)
        h_steps.append(h)              # row i = [h_fwd(t=i) | h_bwd(t=T-1-i)]

    # Epilogue: two sublane stacks + one lane concat -> (T, 2*D2) slab; the time
    # re-ordering of the backward half is folded into the zero pattern of wout,
    # so the output projection is a single matmul.
    h_all = jnp.concatenate(h_steps, axis=0)           # row t: [h_fwd(t)     | h_bwd(T-1-t)]
    h_rev = jnp.concatenate(h_steps[::-1], axis=0)     # row t: [h_fwd(T-1-t) | h_bwd(t)    ]
    h_cat = jnp.concatenate([h_all, h_rev], axis=1).astype(jnp.bfloat16)   # (T, 2*D2)
    logits = jnp.dot(h_cat, wout_ref[...],
                     preferred_element_type=jnp.float32) + bout_ref[...]   # (T, 1)
    out_ref[...] = _sigmoid_fast(logits)


def lstm_p_forward(x, kernel_params):
    T = x.shape[0]
    # Pair each row with its time-reversed partner so the kernel never selects
    # between fwd/bwd inputs inside the serialized recurrence.
    x2 = jnp.concatenate([x, x[::-1]], axis=1).astype(jnp.bfloat16)   # (T, 2*IN)
    vspec = pl.BlockSpec(memory_space=pltpu.MemorySpace.VMEM)
    # Tiny, latency-bound kernel: tell XLA it is cheap so surrounding ops schedule
    # around it instead of assuming a heavyweight custom call.
    cost = pl.CostEstimate(flops=410_000, transcendentals=4_200,
                           bytes_accessed=50_000)
    return pl.pallas_call(
        lstm_p_kernel,
        out_shape=jax.ShapeDtypeStruct((T, 1), jnp.float32),
        in_specs=[vspec] * 6,
        out_specs=vspec,
        cost_estimate=cost,
    )(x2, *kernel_params)


def init_params(key):
    """Deterministic init matching PyTorch shapes (uniform(-1/sqrt(H), 1/sqrt(H)))."""
    ks = jax.random.split(key, 10)
    kb = 1.0 / jnp.sqrt(jnp.float32(HID))

    def u(k, shape, bound):
        return jax.random.uniform(k, shape, jnp.float32, -bound, bound)

    # Weights pre-transposed to (in, 4H) / (H, 4H); PyTorch gate order [i, f, g, o].
    wih_f = u(ks[0], (IN_DIM, 4 * HID), kb)
    whh_f = u(ks[1], (HID, 4 * HID), kb)
    b_f = u(ks[2], (1, 4 * HID), kb) + u(ks[3], (1, 4 * HID), kb)   # b_ih + b_hh
    wih_b = u(ks[4], (IN_DIM, 4 * HID), kb)
    whh_b = u(ks[5], (HID, 4 * HID), kb)
    b_b = u(ks[6], (1, 4 * HID), kb) + u(ks[7], (1, 4 * HID), kb)
    # hidden2tagP: Linear(2H, 1) -> weight transposed to (2H, 1).
    ko = 1.0 / jnp.sqrt(jnp.float32(2 * HID))
    wout = u(ks[8], (2 * HID, 1), ko)
    bout = u(ks[9], (1, 1), ko)
    return (wih_f, whh_f, b_f, wih_b, whh_b, b_b, wout, bout)


def pack_params(wih_f, whh_f, b_f, wih_b, whh_b, b_b, wout, bout):
    """Repack PyTorch-layout params into the fused-kernel layout.

    Packed gate-block order is [f, i, o, g] (each block 2H wide, internally
    [fwd H | bwd H]): sigmoid lanes (f,i,o) are contiguous, only g needs tanh,
    and f/o land at the same 64-lane offset as the c/h state.  W_ih and W_hh are
    block-diagonal over directions so a single matmul serves both recurrences;
    the output weight is zero-padded so the epilogue's backward-time reordering
    costs nothing.  MXU weights cast to bf16.
    """
    H = HID
    order = (1, 0, 3, 2)   # source gates [i, f, g, o] -> packed blocks [f, i, o, g]

    def interleave_cols(a_f, a_b):
        blocks = []
        for g in order:
            blocks.append(a_f[:, g * H:(g + 1) * H])
            blocks.append(a_b[:, g * H:(g + 1) * H])
        return jnp.concatenate(blocks, axis=1)

    zi = jnp.zeros((IN_DIM, 4 * H), jnp.float32)
    wih2 = interleave_cols(
        jnp.concatenate([wih_f, zi], axis=0),      # fwd rows (x[i])      -> fwd columns
        jnp.concatenate([zi, wih_b], axis=0),      # bwd rows (x[T-1-i])  -> bwd columns
    ).astype(jnp.bfloat16)                                              # (2*IN, 8H)

    zh = jnp.zeros((H, 4 * H), jnp.float32)
    whh2 = interleave_cols(
        jnp.concatenate([whh_f, zh], axis=0),      # fwd state rows -> fwd columns
        jnp.concatenate([zh, whh_b], axis=0),      # bwd state rows -> bwd columns
    ).astype(jnp.bfloat16)                                              # (2H, 8H)

    b2 = interleave_cols(b_f, b_b)                                      # (1, 8H) f32

    # Output weight laid out for h_cat = [h_fwd(t) | h_bwd(T-1-t) | h_fwd(T-1-t) | h_bwd(t)].
    wout_f, wout_b = wout[:H], wout[H:]
    zo = jnp.zeros((H, 1), jnp.float32)
    wout_cat = jnp.concatenate([wout_f, zo, zo, wout_b],
                               axis=0).astype(jnp.bfloat16)             # (4H, 1)
    return (wih2, whh2, b2, wout_cat, bout)


def lstm_p_ref(x, params):
    """Pure-JAX reference for correctness checking (PyTorch semantics)."""
    wih_f, whh_f, b_f, wih_b, whh_b, b_b, wout, bout = params
    T, H = x.shape[0], HID

    def run(wih, whh, b, indices):
        h = jnp.zeros((1, H), jnp.float32)
        c = jnp.zeros((1, H), jnp.float32)
        hs = [None] * T
        for t in indices:
            gates = x[t:t + 1] @ wih + h @ whh + b
            i_g = jax.nn.sigmoid(gates[:, :H])
            f_g = jax.nn.sigmoid(gates[:, H:2 * H])
            g_g = jnp.tanh(gates[:, 2 * H:3 * H])
            o_g = jax.nn.sigmoid(gates[:, 3 * H:])
            c = f_g * c + i_g * g_g
            h = o_g * jnp.tanh(c)
            hs[t] = h
        return jnp.concatenate(hs, axis=0)

    hf = run(wih_f, whh_f, b_f, range(T))
    hb = run(wih_b, whh_b, b_b, range(T - 1, -1, -1))
    lstm_out = jnp.concatenate([hf, hb], axis=1)
    return jax.nn.sigmoid(lstm_out @ wout + bout)


if __name__ == "__main__":
    key = jax.random.PRNGKey(0)
    kx, kp = jax.random.split(key)
    x = jax.random.normal(kx, (SEQ, IN_DIM), jnp.float32)
    base_params = init_params(kp)
    kernel_params = pack_params(*base_params)

    out = lstm_p_forward(x, kernel_params)
    out = jax.block_until_ready(out)

    ref = lstm_p_ref(x, base_params)
    assert out.shape == (SEQ, 1)
    assert jnp.all(jnp.isfinite(out))
    assert jnp.allclose(out, ref, atol=2e-2), (out, ref)

    print("KERNEL_OK")
</pallas_src>

<mosaic_0001>
module attributes {stable_mosaic.version = 11 : i64} {
  func.func @lstm_p_kernel(%arg0: memref<8x32xbf16, #tpu.memory_space<vmem>>, %arg1: memref<32x256xbf16, #tpu.memory_space<vmem>>, %arg2: memref<64x256xbf16, #tpu.memory_space<vmem>>, %arg3: memref<1x256xf32, #tpu.memory_space<vmem>>, %arg4: memref<128x1xbf16, #tpu.memory_space<vmem>>, %arg5: memref<1x1xf32, #tpu.memory_space<vmem>>, %arg6: memref<8x1xf32, #tpu.memory_space<vmem>>) attributes {dimension_semantics = [], scalar_prefetch = 0 : i64, scratch_operands = 0 : i64, tpu.core_type = #tpu.core_type<tc>} {
    %c0 = arith.constant 0 : index
    %c0_0 = arith.constant 0 : index
    %0 = vector.load %arg0[%c0, %c0_0] : memref<8x32xbf16, #tpu.memory_space<vmem>>, vector<8x32xbf16>
    %c0_1 = arith.constant 0 : index
    %c0_2 = arith.constant 0 : index
    %1 = vector.load %arg1[%c0_1, %c0_2] : memref<32x256xbf16, #tpu.memory_space<vmem>>, vector<32x256xbf16>
    %cst = arith.constant dense<0.000000e+00> : vector<8x256xf32>
    %2 = tpu.matmul %0, %1, %cst {dimension_numbers = #tpu.dot_dimension_numbers<[1], [0], [0], [1], [0, 0, 1, 1], [], []>} : vector<8x32xbf16>, vector<32x256xbf16>, vector<8x256xf32> -> vector<8x256xf32>
    %c0_3 = arith.constant 0 : index
    %c0_4 = arith.constant 0 : index
    %3 = vector.load %arg3[%c0_3, %c0_4] : memref<1x256xf32, #tpu.memory_space<vmem>>, vector<1x256xf32>
    %4 = vector.broadcast %3 : vector<1x256xf32> to vector<8x256xf32>
    %5 = arith.addf %2, %4 : vector<8x256xf32>
    %c0_5 = arith.constant 0 : index
    %c0_6 = arith.constant 0 : index
    %6 = vector.load %arg2[%c0_5, %c0_6] : memref<64x256xbf16, #tpu.memory_space<vmem>>, vector<64x256xbf16>
    %cst_7 = arith.constant 0.000000e+00 : f32
    %7 = vector.broadcast %cst_7 : f32 to vector<1x64xf32>
    %cst_8 = arith.constant 0.000000e+00 : f32
    %8 = vector.broadcast %cst_8 : f32 to vector<1x64xf32>
    %9 = vector.extract_strided_slice %5 {offsets = [0, 0], sizes = [1, 256], strides = [1, 1]} : vector<8x256xf32> to vector<1x256xf32>
    %10 = arith.truncf %7 : vector<1x64xf32> to vector<1x64xbf16>
    %cst_9 = arith.constant dense<0.000000e+00> : vector<1x256xf32>
    %11 = tpu.matmul %10, %6, %cst_9 {dimension_numbers = #tpu.dot_dimension_numbers<[1], [0], [0], [1], [0, 0, 1, 1], [], []>} : vector<1x64xbf16>, vector<64x256xbf16>, vector<1x256xf32> -> vector<1x256xf32>
    %12 = arith.addf %9, %11 : vector<1x256xf32>
    %13 = vector.extract_strided_slice %12 {offsets = [0, 0], sizes = [1, 192], strides = [1, 1]} : vector<1x256xf32> to vector<1x192xf32>
    %cst_10 = arith.constant 0.000000e+00 : f32
    %14 = vector.broadcast %cst_10 : f32 to vector<1x192xf32>
    %15 = arith.subf %14, %13 : vector<1x192xf32>
    %16 = math.exp %15 : vector<1x192xf32>
    %cst_11 = arith.constant 1.000000e+00 : f32
    %17 = vector.broadcast %cst_11 : f32 to vector<1x192xf32>
    %18 = arith.addf %17, %16 : vector<1x192xf32>
    %19 = tpu.reciprocal %18 {approx = true} : vector<1x192xf32> -> vector<1x192xf32>
    %20 = vector.extract_strided_slice %19 {offsets = [0, 0], sizes = [1, 64], strides = [1, 1]} : vector<1x192xf32> to vector<1x64xf32>
    %21 = vector.extract_strided_slice %19 {offsets = [0, 64], sizes = [1, 64], strides = [1, 1]} : vector<1x192xf32> to vector<1x64xf32>
    %22 = vector.extract_strided_slice %19 {offsets = [0, 128], sizes = [1, 64], strides = [1, 1]} : vector<1x192xf32> to vector<1x64xf32>
    %23 = vector.extract_strided_slice %12 {offsets = [0, 192], sizes = [1, 64], strides = [1, 1]} : vector<1x256xf32> to vector<1x64xf32>
    %24 = math.tanh %23 : vector<1x64xf32>
    %25 = arith.mulf %20, %8 : vector<1x64xf32>
    %26 = arith.mulf %21, %24 : vector<1x64xf32>
    %27 = arith.addf %25, %26 : vector<1x64xf32>
    %28 = math.tanh %27 : vector<1x64xf32>
    %29 = arith.mulf %22, %28 : vector<1x64xf32>
    %30 = vector.extract_strided_slice %5 {offsets = [1, 0], sizes = [1, 256], strides = [1, 1]} : vector<8x256xf32> to vector<1x256xf32>
    %31 = arith.truncf %29 : vector<1x64xf32> to vector<1x64xbf16>
    %cst_12 = arith.constant dense<0.000000e+00> : vector<1x256xf32>
    %32 = tpu.matmul %31, %6, %cst_12 {dimension_numbers = #tpu.dot_dimension_numbers<[1], [0], [0], [1], [0, 0, 1, 1], [], []>} : vector<1x64xbf16>, vector<64x256xbf16>, vector<1x256xf32> -> vector<1x256xf32>
    %33 = arith.addf %30, %32 : vector<1x256xf32>
    %34 = vector.extract_strided_slice %33 {offsets = [0, 0], sizes = [1, 192], strides = [1, 1]} : vector<1x256xf32> to vector<1x192xf32>
    %cst_13 = arith.constant 0.000000e+00 : f32
    %35 = vector.broadcast %cst_13 : f32 to vector<1x192xf32>
    %36 = arith.subf %35, %34 : vector<1x192xf32>
    %37 = math.exp %36 : vector<1x192xf32>
    %cst_14 = arith.constant 1.000000e+00 : f32
    %38 = vector.broadcast %cst_14 : f32 to vector<1x192xf32>
    %39 = arith.addf %38, %37 : vector<1x192xf32>
    %40 = tpu.reciprocal %39 {approx = true} : vector<1x192xf32> -> vector<1x192xf32>
    %41 = vector.extract_strided_slice %40 {offsets = [0, 0], sizes = [1, 64], strides = [1, 1]} : vector<1x192xf32> to vector<1x64xf32>
    %42 = vector.extract_strided_slice %40 {offsets = [0, 64], sizes = [1, 64], strides = [1, 1]} : vector<1x192xf32> to vector<1x64xf32>
    %43 = vector.extract_strided_slice %40 {offsets = [0, 128], sizes = [1, 64], strides = [1, 1]} : vector<1x192xf32> to vector<1x64xf32>
    %44 = vector.extract_strided_slice %33 {offsets = [0, 192], sizes = [1, 64], strides = [1, 1]} : vector<1x256xf32> to vector<1x64xf32>
    %45 = math.tanh %44 : vector<1x64xf32>
    %46 = arith.mulf %41, %27 : vector<1x64xf32>
    %47 = arith.mulf %42, %45 : vector<1x64xf32>
    %48 = arith.addf %46, %47 : vector<1x64xf32>
    %49 = math.tanh %48 : vector<1x64xf32>
    %50 = arith.mulf %43, %49 : vector<1x64xf32>
    %51 = vector.extract_strided_slice %5 {offsets = [2, 0], sizes = [1, 256], strides = [1, 1]} : vector<8x256xf32> to vector<1x256xf32>
    %52 = arith.truncf %50 : vector<1x64xf32> to vector<1x64xbf16>
    %cst_15 = arith.constant dense<0.000000e+00> : vector<1x256xf32>
    %53 = tpu.matmul %52, %6, %cst_15 {dimension_numbers = #tpu.dot_dimension_numbers<[1], [0], [0], [1], [0, 0, 1, 1], [], []>} : vector<1x64xbf16>, vector<64x256xbf16>, vector<1x256xf32> -> vector<1x256xf32>
    %54 = arith.addf %51, %53 : vector<1x256xf32>
    %55 = vector.extract_strided_slice %54 {offsets = [0, 0], sizes = [1, 192], strides = [1, 1]} : vector<1x256xf32> to vector<1x192xf32>
    %cst_16 = arith.constant 0.000000e+00 : f32
    %56 = vector.broadcast %cst_16 : f32 to vector<1x192xf32>
    %57 = arith.subf %56, %55 : vector<1x192xf32>
    %58 = math.exp %57 : vector<1x192xf32>
    %cst_17 = arith.constant 1.000000e+00 : f32
    %59 = vector.broadcast %cst_17 : f32 to vector<1x192xf32>
    %60 = arith.addf %59, %58 : vector<1x192xf32>
    %61 = tpu.reciprocal %60 {approx = true} : vector<1x192xf32> -> vector<1x192xf32>
    %62 = vector.extract_strided_slice %61 {offsets = [0, 0], sizes = [1, 64], strides = [1, 1]} : vector<1x192xf32> to vector<1x64xf32>
    %63 = vector.extract_strided_slice %61 {offsets = [0, 64], sizes = [1, 64], strides = [1, 1]} : vector<1x192xf32> to vector<1x64xf32>
    %64 = vector.extract_strided_slice %61 {offsets = [0, 128], sizes = [1, 64], strides = [1, 1]} : vector<1x192xf32> to vector<1x64xf32>
    %65 = vector.extract_strided_slice %54 {offsets = [0, 192], sizes = [1, 64], strides = [1, 1]} : vector<1x256xf32> to vector<1x64xf32>
    %66 = math.tanh %65 : vector<1x64xf32>
    %67 = arith.mulf %62, %48 : vector<1x64xf32>
    %68 = arith.mulf %63, %66 : vector<1x64xf32>
    %69 = arith.addf %67, %68 : vector<1x64xf32>
    %70 = math.tanh %69 : vector<1x64xf32>
    %71 = arith.mulf %64, %70 : vector<1x64xf32>
    %72 = vector.extract_strided_slice %5 {offsets = [3, 0], sizes = [1, 256], strides = [1, 1]} : vector<8x256xf32> to vector<1x256xf32>
    %73 = arith.truncf %71 : vector<1x64xf32> to vector<1x64xbf16>
    %cst_18 = arith.constant dense<0.000000e+00> : vector<1x256xf32>
    %74 = tpu.matmul %73, %6, %cst_18 {dimension_numbers = #tpu.dot_dimension_numbers<[1], [0], [0], [1], [0, 0, 1, 1], [], []>} : vector<1x64xbf16>, vector<64x256xbf16>, vector<1x256xf32> -> vector<1x256xf32>
    %75 = arith.addf %72, %74 : vector<1x256xf32>
    %76 = vector.extract_strided_slice %75 {offsets = [0, 0], sizes = [1, 192], strides = [1, 1]} : vector<1x256xf32> to vector<1x192xf32>
    %cst_19 = arith.constant 0.000000e+00 : f32
    %77 = vector.broadcast %cst_19 : f32 to vector<1x192xf32>
    %78 = arith.subf %77, %76 : vector<1x192xf32>
    %79 = math.exp %78 : vector<1x192xf32>
    %cst_20 = arith.constant 1.000000e+00 : f32
    %80 = vector.broadcast %cst_20 : f32 to vector<1x192xf32>
    %81 = arith.addf %80, %79 : vector<1x192xf32>
    %82 = tpu.reciprocal %81 {approx = true} : vector<1x192xf32> -> vector<1x192xf32>
    %83 = vector.extract_strided_slice %82 {offsets = [0, 0], sizes = [1, 64], strides = [1, 1]} : vector<1x192xf32> to vector<1x64xf32>
    %84 = vector.extract_strided_slice %82 {offsets = [0, 64], sizes = [1, 64], strides = [1, 1]} : vector<1x192xf32> to vector<1x64xf32>
    %85 = vector.extract_strided_slice %82 {offsets = [0, 128], sizes = [1, 64], strides = [1, 1]} : vector<1x192xf32> to vector<1x64xf32>
    %86 = vector.extract_strided_slice %75 {offsets = [0, 192], sizes = [1, 64], strides = [1, 1]} : vector<1x256xf32> to vector<1x64xf32>
    %87 = math.tanh %86 : vector<1x64xf32>
    %88 = arith.mulf %83, %69 : vector<1x64xf32>
    %89 = arith.mulf %84, %87 : vector<1x64xf32>
    %90 = arith.addf %88, %89 : vector<1x64xf32>
    %91 = math.tanh %90 : vector<1x64xf32>
    %92 = arith.mulf %85, %91 : vector<1x64xf32>
    %93 = vector.extract_strided_slice %5 {offsets = [4, 0], sizes = [1, 256], strides = [1, 1]} : vector<8x256xf32> to vector<1x256xf32>
    %94 = arith.truncf %92 : vector<1x64xf32> to vector<1x64xbf16>
    %cst_21 = arith.constant dense<0.000000e+00> : vector<1x256xf32>
    %95 = tpu.matmul %94, %6, %cst_21 {dimension_numbers = #tpu.dot_dimension_numbers<[1], [0], [0], [1], [0, 0, 1, 1], [], []>} : vector<1x64xbf16>, vector<64x256xbf16>, vector<1x256xf32> -> vector<1x256xf32>
    %96 = arith.addf %93, %95 : vector<1x256xf32>
    %97 = vector.extract_strided_slice %96 {offsets = [0, 0], sizes = [1, 192], strides = [1, 1]} : vector<1x256xf32> to vector<1x192xf32>
    %cst_22 = arith.constant 0.000000e+00 : f32
    %98 = vector.broadcast %cst_22 : f32 to vector<1x192xf32>
    %99 = arith.subf %98, %97 : vector<1x192xf32>
    %100 = math.exp %99 : vector<1x192xf32>
    %cst_23 = arith.constant 1.000000e+00 : f32
    %101 = vector.broadcast %cst_23 : f32 to vector<1x192xf32>
    %102 = arith.addf %101, %100 : vector<1x192xf32>
    %103 = tpu.reciprocal %102 {approx = true} : vector<1x192xf32> -> vector<1x192xf32>
    %104 = vector.extract_strided_slice %103 {offsets = [0, 0], sizes = [1, 64], strides = [1, 1]} : vector<1x192xf32> to vector<1x64xf32>
    %105 = vector.extract_strided_slice %103 {offsets = [0, 64], sizes = [1, 64], strides = [1, 1]} : vector<1x192xf32> to vector<1x64xf32>
    %106 = vector.extract_strided_slice %103 {offsets = [0, 128], sizes = [1, 64], strides = [1, 1]} : vector<1x192xf32> to vector<1x64xf32>
    %107 = vector.extract_strided_slice %96 {offsets = [0, 192], sizes = [1, 64], strides = [1, 1]} : vector<1x256xf32> to vector<1x64xf32>
    %108 = math.tanh %107 : vector<1x64xf32>
    %109 = arith.mulf %104, %90 : vector<1x64xf32>
    %110 = arith.mulf %105, %108 : vector<1x64xf32>
    %111 = arith.addf %109, %110 : vector<1x64xf32>
    %112 = math.tanh %111 : vector<1x64xf32>
    %113 = arith.mulf %106, %112 : vector<1x64xf32>
    %114 = vector.extract_strided_slice %5 {offsets = [5, 0], sizes = [1, 256], strides = [1, 1]} : vector<8x256xf32> to vector<1x256xf32>
    %115 = arith.truncf %113 : vector<1x64xf32> to vector<1x64xbf16>
    %cst_24 = arith.constant dense<0.000000e+00> : vector<1x256xf32>
    %116 = tpu.matmul %115, %6, %cst_24 {dimension_numbers = #tpu.dot_dimension_numbers<[1], [0], [0], [1], [0, 0, 1, 1], [], []>} : vector<1x64xbf16>, vector<64x256xbf16>, vector<1x256xf32> -> vector<1x256xf32>
    %117 = arith.addf %114, %116 : vector<1x256xf32>
    %118 = vector.extract_strided_slice %117 {offsets = [0, 0], sizes = [1, 192], strides = [1, 1]} : vector<1x256xf32> to vector<1x192xf32>
    %cst_25 = arith.constant 0.000000e+00 : f32
    %119 = vector.broadcast %cst_25 : f32 to vector<1x192xf32>
    %120 = arith.subf %119, %118 : vector<1x192xf32>
    %121 = math.exp %120 : vector<1x192xf32>
    %cst_26 = arith.constant 1.000000e+00 : f32
    %122 = vector.broadcast %cst_26 : f32 to vector<1x192xf32>
    %123 = arith.addf %122, %121 : vector<1x192xf32>
    %124 = tpu.reciprocal %123 {approx = true} : vector<1x192xf32> -> vector<1x192xf32>
    %125 = vector.extract_strided_slice %124 {offsets = [0, 0], sizes = [1, 64], strides = [1, 1]} : vector<1x192xf32> to vector<1x64xf32>
    %126 = vector.extract_strided_slice %124 {offsets = [0, 64], sizes = [1, 64], strides = [1, 1]} : vector<1x192xf32> to vector<1x64xf32>
    %127 = vector.extract_strided_slice %124 {offsets = [0, 128], sizes = [1, 64], strides = [1, 1]} : vector<1x192xf32> to vector<1x64xf32>
    %128 = vector.extract_strided_slice %117 {offsets = [0, 192], sizes = [1, 64], strides = [1, 1]} : vector<1x256xf32> to vector<1x64xf32>
    %129 = math.tanh %128 : vector<1x64xf32>
    %130 = arith.mulf %125, %111 : vector<1x64xf32>
    %131 = arith.mulf %126, %129 : vector<1x64xf32>
    %132 = arith.addf %130, %131 : vector<1x64xf32>
    %133 = math.tanh %132 : vector<1x64xf32>
    %134 = arith.mulf %127, %133 : vector<1x64xf32>
    %135 = vector.extract_strided_slice %5 {offsets = [6, 0], sizes = [1, 256], strides = [1, 1]} : vector<8x256xf32> to vector<1x256xf32>
    %136 = arith.truncf %134 : vector<1x64xf32> to vector<1x64xbf16>
    %cst_27 = arith.constant dense<0.000000e+00> : vector<1x256xf32>
    %137 = tpu.matmul %136, %6, %cst_27 {dimension_numbers = #tpu.dot_dimension_numbers<[1], [0], [0], [1], [0, 0, 1, 1], [], []>} : vector<1x64xbf16>, vector<64x256xbf16>, vector<1x256xf32> -> vector<1x256xf32>
    %138 = arith.addf %135, %137 : vector<1x256xf32>
    %139 = vector.extract_strided_slice %138 {offsets = [0, 0], sizes = [1, 192], strides = [1, 1]} : vector<1x256xf32> to vector<1x192xf32>
    %cst_28 = arith.constant 0.000000e+00 : f32
    %140 = vector.broadcast %cst_28 : f32 to vector<1x192xf32>
    %141 = arith.subf %140, %139 : vector<1x192xf32>
    %142 = math.exp %141 : vector<1x192xf32>
    %cst_29 = arith.constant 1.000000e+00 : f32
    %143 = vector.broadcast %cst_29 : f32 to vector<1x192xf32>
    %144 = arith.addf %143, %142 : vector<1x192xf32>
    %145 = tpu.reciprocal %144 {approx = true} : vector<1x192xf32> -> vector<1x192xf32>
    %146 = vector.extract_strided_slice %145 {offsets = [0, 0], sizes = [1, 64], strides = [1, 1]} : vector<1x192xf32> to vector<1x64xf32>
    %147 = vector.extract_strided_slice %145 {offsets = [0, 64], sizes = [1, 64], strides = [1, 1]} : vector<1x192xf32> to vector<1x64xf32>
    %148 = vector.extract_strided_slice %145 {offsets = [0, 128], sizes = [1, 64], strides = [1, 1]} : vector<1x192xf32> to vector<1x64xf32>
    %149 = vector.extract_strided_slice %138 {offsets = [0, 192], sizes = [1, 64], strides = [1, 1]} : vector<1x256xf32> to vector<1x64xf32>
    %150 = math.tanh %149 : vector<1x64xf32>
    %151 = arith.mulf %146, %132 : vector<1x64xf32>
    %152 = arith.mulf %147, %150 : vector<1x64xf32>
    %153 = arith.addf %151, %152 : vector<1x64xf32>
    %154 = math.tanh %153 : vector<1x64xf32>
    %155 = arith.mulf %148, %154 : vector<1x64xf32>
    %156 = vector.extract_strided_slice %5 {offsets = [7, 0], sizes = [1, 256], strides = [1, 1]} : vector<8x256xf32> to vector<1x256xf32>
    %157 = arith.truncf %155 : vector<1x64xf32> to vector<1x64xbf16>
    %cst_30 = arith.constant dense<0.000000e+00> : vector<1x256xf32>
    %158 = tpu.matmul %157, %6, %cst_30 {dimension_numbers = #tpu.dot_dimension_numbers<[1], [0], [0], [1], [0, 0, 1, 1], [], []>} : vector<1x64xbf16>, vector<64x256xbf16>, vector<1x256xf32> -> vector<1x256xf32>
    %159 = arith.addf %156, %158 : vector<1x256xf32>
    %160 = vector.extract_strided_slice %159 {offsets = [0, 0], sizes = [1, 192], strides = [1, 1]} : vector<1x256xf32> to vector<1x192xf32>
    %cst_31 = arith.constant 0.000000e+00 : f32
    %161 = vector.broadcast %cst_31 : f32 to vector<1x192xf32>
    %162 = arith.subf %161, %160 : vector<1x192xf32>
    %163 = math.exp %162 : vector<1x192xf32>
    %cst_32 = arith.constant 1.000000e+00 : f32
    %164 = vector.broadcast %cst_32 : f32 to vector<1x192xf32>
    %165 = arith.addf %164, %163 : vector<1x192xf32>
    %166 = tpu.reciprocal %165 {approx = true} : vector<1x192xf32> -> vector<1x192xf32>
    %167 = vector.extract_strided_slice %166 {offsets = [0, 0], sizes = [1, 64], strides = [1, 1]} : vector<1x192xf32> to vector<1x64xf32>
    %168 = vector.extract_strided_slice %166 {offsets = [0, 64], sizes = [1, 64], strides = [1, 1]} : vector<1x192xf32> to vector<1x64xf32>
    %169 = vector.extract_strided_slice %166 {offsets = [0, 128], sizes = [1, 64], strides = [1, 1]} : vector<1x192xf32> to vector<1x64xf32>
    %170 = vector.extract_strided_slice %159 {offsets = [0, 192], sizes = [1, 64], strides = [1, 1]} : vector<1x256xf32> to vector<1x64xf32>
    %171 = math.tanh %170 : vector<1x64xf32>
    %172 = arith.mulf %167, %153 : vector<1x64xf32>
    %173 = arith.mulf %168, %171 : vector<1x64xf32>
    %174 = arith.addf %172, %173 : vector<1x64xf32>
    %175 = math.tanh %174 : vector<1x64xf32>
    %176 = arith.mulf %169, %175 : vector<1x64xf32>
    %177 = tpu.concatenate %29, %50, %71, %92, %113, %134, %155, %176 in 0 : vector<1x64xf32>, vector<1x64xf32>, vector<1x64xf32>, vector<1x64xf32>, vector<1x64xf32>, vector<1x64xf32>, vector<1x64xf32>, vector<1x64xf32> -> vector<8x64xf32>
    %178 = tpu.concatenate %176, %155, %134, %113, %92, %71, %50, %29 in 0 : vector<1x64xf32>, vector<1x64xf32>, vector<1x64xf32>, vector<1x64xf32>, vector<1x64xf32>, vector<1x64xf32>, vector<1x64xf32>, vector<1x64xf32> -> vector<8x64xf32>
    %179 = tpu.concatenate %177, %178 in 1 : vector<8x64xf32>, vector<8x64xf32> -> vector<8x128xf32>
    %180 = arith.truncf %179 : vector<8x128xf32> to vector<8x128xbf16>
    %c0_33 = arith.constant 0 : index
    %c0_34 = arith.constant 0 : index
    %181 = vector.load %arg4[%c0_33, %c0_34] : memref<128x1xbf16, #tpu.memory_space<vmem>>, vector<128x1xbf16>
    %cst_35 = arith.constant dense<0.000000e+00> : vector<8x1xf32>
    %182 = tpu.matmul %180, %181, %cst_35 {dimension_numbers = #tpu.dot_dimension_numbers<[1], [0], [0], [1], [0, 0, 1, 1], [], []>} : vector<8x128xbf16>, vector<128x1xbf16>, vector<8x1xf32> -> vector<8x1xf32>
    %c0_36 = arith.constant 0 : index
    %c0_37 = arith.constant 0 : index
    %183 = vector.load %arg5[%c0_36, %c0_37] : memref<1x1xf32, #tpu.memory_space<vmem>>, vector<1x1xf32>
    %184 = vector.broadcast %183 : vector<1x1xf32> to vector<8x1xf32>
    %185 = arith.addf %182, %184 : vector<8x1xf32>
    %cst_38 = arith.constant 0.000000e+00 : f32
    %186 = vector.broadcast %cst_38 : f32 to vector<8x1xf32>
    %187 = arith.subf %186, %185 : vector<8x1xf32>
    %188 = math.exp %187 : vector<8x1xf32>
    %cst_39 = arith.constant 1.000000e+00 : f32
    %189 = vector.broadcast %cst_39 : f32 to vector<8x1xf32>
    %190 = arith.addf %189, %188 : vector<8x1xf32>
    %191 = tpu.reciprocal %190 {approx = true} : vector<8x1xf32> -> vector<8x1xf32>
    %c0_40 = arith.constant 0 : index
    %c0_41 = arith.constant 0 : index
    %192 = vector.load %arg6[%c0_40, %c0_41] : memref<8x1xf32, #tpu.memory_space<vmem>>, vector<8x1xf32>
    tpu.vector_store %arg6[%c0_40, %c0_41], %191 {strides = array<i32>} : memref<8x1xf32, #tpu.memory_space<vmem>>, vector<8x1xf32>,
    return
  }
}

</mosaic_0001>

<llo_original>
// kernel: tpu_custom_call.1
$region0: #{tpu_custom_call.1}
  #allocation0 [shape = 'u32[]', space=smem, size = 0x4, offset = 0x4, fixed_abs, tag = 'smem constant byte address 0x4 - core index']
  #allocation1 [shape = 'u32[144,128]{1,0:T(1,128)}', space=vmem, size = 0x12000, scoped, tag = 'internal scratch']
  #allocation2 [shape = 'f32[1,1]{1,0:T(1,128)S(1)}', space=vmem, size = 0x200, scoped, tag = 'scoped memory for tpu_custom_call.1']
  %s0 = inlined_call_operand.vmem [shape: bf16[8,32], index: 0, kind: input, shape index: {}]
  %s1 = inlined_call_operand.hbm [shape: bf16[32,256], index: 1, kind: input, shape index: {}]
  %s2 = inlined_call_operand.vmem [shape: bf16[64,256], index: 2, kind: input, shape index: {}]
  %s3 = inlined_call_operand.vmem [shape: f32[1,256], index: 3, kind: input, shape index: {}]
  %s4 = inlined_call_operand.vmem [shape: bf16[128,1], index: 4, kind: input, shape index: {}]
  %s5 = inlined_call_operand.<no memory space> [shape: f32[1,1], index: 5, kind: input, shape index: {}]
  %s6 = inlined_call_operand.vmem [shape: f32[8,1], index: 6, kind: output, shape index: {}]
  %s7 = sld [smem:[#allocation0]]
  $region38: #{tpu_custom_call.1} parent=0
    _
  %s9 = ssub.s32 1, %s7
  %s10 = scalar_select 0, %s9, %s7
  %v11 = vstv %s5
  %12 = vst [vmem:[#allocation2] sm:$0x1] %v11
  $region1: #{tpu_custom_call.1} parent=0
    #allocation3 [shape = 'u8[16384]{0}', space=vmem, size = 0x4000, scoped, tag = 'input window, operand 1, single buffered']
    #allocation4 [shape = 's32[1]{0}', space=sflag, size = 0x4, scoped, tag = 'scoped memory for tpu_custom_call.1']
    %13 = vsyncpa [#allocation4], 0
    // Predicated region
    $region2: #{tpu_custom_call.1} parent=1 // pred_check
      _
    $region3: #{tpu_custom_call.1} parent=1 // pred_check_branch
      %15 = sbr.rel (0) target = $region5
    $region4: #{tpu_custom_call.1} parent=1 // pred_region
      _
    $region5: #{tpu_custom_call.1} parent=1 // pred_fallthru
      _
    // Predicated region
    $region6: #{tpu_custom_call.1} parent=1 // pred_check
      _
    $region7: #{tpu_custom_call.1} parent=1 // pred_check_branch
      %17 = sbr.rel (0) target = $region9
    $region8: #{tpu_custom_call.1} parent=1 // pred_region
      %s19 = ssub.s32 512, 512
      %20 = vsyncadd [#allocation4], %s19
      %s21 = sshll.u32 [#allocation3], 4
      %s22 = int_to_ptr.vmem [resolvable:$true] %s21
      %27 = dma.hbm_to_vmem [thread:$0]  %s1, 512, %s22, [#allocation4], 128, 128, 8
    $region9: #{tpu_custom_call.1} parent=1 // pred_fallthru
      _
    // Predicated region
    $region10: #{tpu_custom_call.1} parent=1 // pred_check
      _
    $region11: #{tpu_custom_call.1} parent=1 // pred_check_branch
      %29 = sbr.rel (0) target = $region13
    $region12: #{tpu_custom_call.1} parent=1 // pred_region
      _
    $region13: #{tpu_custom_call.1} parent=1 // pred_fallthru
      _
    // Predicated region
    $region14: #{tpu_custom_call.1} parent=1 // pred_check
      _
    $region15: #{tpu_custom_call.1} parent=1 // pred_check_branch
      %31 = sbr.rel (0) target = $region17
    $region16: #{tpu_custom_call.1} parent=1 // pred_region
      _
    $region17: #{tpu_custom_call.1} parent=1 // pred_fallthru
      _
    // Predicated region
    $region18: #{tpu_custom_call.1} parent=1 // pred_check
      _
    $region19: #{tpu_custom_call.1} parent=1 // pred_check_branch
      %33 = sbr.rel (0) target = $region21
    $region20: #{tpu_custom_call.1} parent=1 // pred_region
      _
    $region21: #{tpu_custom_call.1} parent=1 // pred_fallthru
      _
    // Predicated region
    $region22: #{tpu_custom_call.1} parent=1 // pred_check
      _
    $region23: #{tpu_custom_call.1} parent=1 // pred_check_branch
      %35 = sbr.rel (0) target = $region25
    $region24: #{tpu_custom_call.1} parent=1 // pred_region
      _
    $region25: #{tpu_custom_call.1} parent=1 // pred_fallthru
      _
    // Predicated region
    $region26: #{tpu_custom_call.1} parent=1 // pred_check
      _
    $region27: #{tpu_custom_call.1} parent=1 // pred_check_branch
      %37 = sbr.rel (0) target = $region29
    $region28: #{tpu_custom_call.1} parent=1 // pred_region
      %38 = dma.done [#allocation4], 512
    $region29: #{tpu_custom_call.1} parent=1 // pred_fallthru
      _
    %v40 = vld [vmem:[%s0] sm:$0xf]
    %v41 = vld [vmem:[#allocation3] sm:$0xff]
    %v42 = vld [vmem:[#allocation3 + $0x8] sm:$0xff]
    %v43 = vld [vmem:[#allocation3 + $0x10] sm:$0xff]
    %v44 = vld [vmem:[#allocation3 + $0x18] sm:$0xff]
    %v45 = vld [vmem:[%s3] sm:$0x3]
    %v47 = vlaneseq
    %v48 = vshrl.u32 %v47, 7
    %v49 = vsub.s32 0, %v48
    %v50 = vrot.slane %v45, %v49
    %v51 = vlaneseq
    %v52 = vshrl.u32 %v51, 7
    %v53 = vsub.s32 1, %v52
    %v54 = vrot.slane %v45, %v53
    %v61 = vunpack.c.l.b16 %v41
    %v62 = vunpack.c.h.b16 %v41
    %v63 = vunpack.c.l.b16 %v42
    %v64 = vunpack.c.h.b16 %v42
    %v65 = vunpack.c.l.b16 %v43
    %v66 = vunpack.c.h.b16 %v43
    %v67 = vunpack.c.l.b16 %v44
    %v68 = vunpack.c.h.b16 %v44
    %v69 = vpack.c.b16 %v63, %v61
    %v70 = vpack.c.b16 %v64, %v62
    %v71 = vpack.c.b16 %v67, %v65
    %v72 = vpack.c.b16 %v68, %v66
    %vm77 = vcmask 261120
    %v79 = vsel %vm77, %v40, 0
    %81 = vmatprep.subr.bf16.mxu0 0
    %82 = vmatpush1.bf16.msra.mxu0 0
    %83 = vmatprep.subr.bf16.mxu0 0
    %84 = vmatpush1.bf16.msra.mxu0 0
    %85 = vmatprep.subr.bf16.mxu0 0
    %86 = vmatpush1.bf16.msra.mxu0 0
    %87 = vmatprep.subr.bf16.mxu0 0
    %88 = vmatpush1.bf16.msra.mxu0 0
    %89 = vmatprep.subr.bf16.mxu0 0
    %90 = vmatpush1.bf16.msra.mxu0 0
    %91 = vmatprep.subr.bf16.mxu0 0
    %92 = vmatpush1.bf16.msra.mxu0 0
    %93 = vmatprep.subr.bf16.mxu0 %v72
    %94 = vmatpush1.bf16.msra.mxu0 %v71
    %95 = vmatprep.subr.bf16.mxu0 %v70
    %96 = vmatpush1.bf16.msra.mxu0 %v69
    %97 = vmatprep.subr.bf16.mxu0 0
    %98 = vmatpush2.bf16.msra.mxu0 0
    %99 = vmatprep.subr.bf16.mxu0 0
    %100 = vmatpush2.bf16.msra.mxu0 0
    %101 = vmatprep.subr.bf16.mxu0 0
    %102 = vmatpush2.bf16.msra.mxu0 0
    %103 = vmatprep.subr.bf16.mxu0 0
    %104 = vmatpush2.bf16.msra.mxu0 0
    %105 = vmatprep.subr.bf16.mxu0 0
    %106 = vmatpush2.bf16.msra.mxu0 0
    %107 = vmatprep.subr.bf16.mxu0 0
    %108 = vmatpush2.bf16.msra.mxu0 0
    %109 = vmatprep.subr.bf16.mxu0 0
    %110 = vmatpush2.bf16.msra.mxu0 0
    %111 = vmatprep.subr.bf16.mxu0 0
    %112 = vmatpush2.bf16.msra.mxu0 0
    %113 = vmatprep.mubr.bf16.mxu0 0
    %114 = vmatmul.mubr.bf16.gmra.mxu0 %v79
    %v115 = vpop.f32.mrf.mxu0
    %v116 = vadd.f32 %v50, %v115
    %v117 = vpop.f32.mrf.mxu0
    %v118 = vadd.f32 %v54, %v117
    %v119 = vpop.f32.mrf.mxu0
    %v120 = vpop.f32.mrf.mxu0
    %121 = vdwg.mxu0
    %v122 = vld [vmem:[%s2] sm:$0xff]
    %v123 = vld [vmem:[%s2 + $0x8] sm:$0xff]
    %v124 = vld [vmem:[%s2 + $0x10] sm:$0xff]
    %v125 = vld [vmem:[%s2 + $0x18] sm:$0xff]
    %v126 = vld [vmem:[%s2 + $0x20] sm:$0xff]
    %v127 = vld [vmem:[%s2 + $0x28] sm:$0xff]
    %v128 = vld [vmem:[%s2 + $0x30] sm:$0xff]
    %v129 = vld [vmem:[%s2 + $0x38] sm:$0xff]
    %v138 = vunpack.c.l.b16 %v122
    %v139 = vunpack.c.h.b16 %v122
    %v140 = vunpack.c.l.b16 %v123
    %v141 = vunpack.c.h.b16 %v123
    %v142 = vunpack.c.l.b16 %v124
    %v143 = vunpack.c.h.b16 %v124
    %v144 = vunpack.c.l.b16 %v125
    %v145 = vunpack.c.h.b16 %v125
    %v146 = vunpack.c.l.b16 %v126
    %v147 = vunpack.c.h.b16 %v126
    %v148 = vunpack.c.l.b16 %v127
    %v149 = vunpack.c.h.b16 %v127
    %v150 = vunpack.c.l.b16 %v128
    %v151 = vunpack.c.h.b16 %v128
    %v152 = vunpack.c.l.b16 %v129
    %v153 = vunpack.c.h.b16 %v129
    %v154 = vpack.c.b16 %v140, %v138
    %v155 = vpack.c.b16 %v141, %v139
    %v156 = vpack.c.b16 %v144, %v142
    %v157 = vpack.c.b16 %v145, %v143
    %v158 = vpack.c.b16 %v148, %v146
    %v159 = vpack.c.b16 %v149, %v147
    %v160 = vpack.c.b16 %v152, %v150
    %v161 = vpack.c.b16 %v153, %v151
    %vm170 = vcmask 523264
    %v172 = vsel %vm170, 0, 0
    %174 = vmatprep.subr.bf16.mxu0 0
    %175 = vmatpush1.bf16.msra.mxu0 0
    %176 = vmatprep.subr.bf16.mxu0 0
    %177 = vmatpush1.bf16.msra.mxu0 0
    %178 = vmatprep.subr.bf16.mxu0 0
    %179 = vmatpush1.bf16.msra.mxu0 0
    %180 = vmatprep.subr.bf16.mxu0 0
    %181 = vmatpush1.bf16.msra.mxu0 0
    %182 = vmatprep.subr.bf16.mxu0 %v161
    %183 = vmatpush1.bf16.msra.mxu0 %v160
    %184 = vmatprep.subr.bf16.mxu0 %v159
    %185 = vmatpush1.bf16.msra.mxu0 %v158
    %186 = vmatprep.subr.bf16.mxu0 %v157
    %187 = vmatpush1.bf16.msra.mxu0 %v156
    %188 = vmatprep.subr.bf16.mxu0 %v155
    %189 = vmatpush1.bf16.msra.mxu0 %v154
    %190 = vmatprep.subr.bf16.mxu0 0
    %191 = vmatpush2.bf16.msra.mxu0 0
    %192 = vmatprep.subr.bf16.mxu0 0
    %193 = vmatpush2.bf16.msra.mxu0 0
    %194 = vmatprep.subr.bf16.mxu0 0
    %195 = vmatpush2.bf16.msra.mxu0 0
    %196 = vmatprep.subr.bf16.mxu0 0
    %197 = vmatpush2.bf16.msra.mxu0 0
    %198 = vmatprep.subr.bf16.mxu0 0
    %199 = vmatpush2.bf16.msra.mxu0 0
    %200 = vmatprep.subr.bf16.mxu0 0
    %201 = vmatpush2.bf16.msra.mxu0 0
    %202 = vmatprep.subr.bf16.mxu0 0
    %203 = vmatpush2.bf16.msra.mxu0 0
    %204 = vmatprep.subr.bf16.mxu0 0
    %205 = vmatpush2.bf16.msra.mxu0 0
    %206 = vmatprep.mubr.bf16.mxu0 0
    %207 = vmatmul.mubr.bf16.gmra.mxu0 %v172
    %v208 = vpop.f32.mrf.mxu0
    %v209 = vadd.f32 0.0, %v208
    %v210 = vpop.f32.mrf.mxu0
    %v211 = vadd.f32 0.0, %v210
    %v212 = vpop.f32.mrf.mxu0
    %v213 = vpop.f32.mrf.mxu0
    %214 = vdwg.mxu0
    %v215 = vadd.f32 %v116, %v209
    %v216 = vadd.f32 %v118, %v211
    %v217 = vsub.f32 0.0, %v215
    %v218 = vsub.f32 0.0, %v216
    %v219 = vmul.f32 %v217, 1.442695
    %v220 = vpow.pop %v219
    %v221 = vmul.f32 %v218, 1.442695
    %v222 = vpow.pop %v221
    %v223 = vadd.f32 %v220, 1.0
    %v224 = vadd.f32 %v222, 1.0
    %v225 = vrcp.pop %v223
    %v226 = vrcp.pop %v224
    %v227 = vtanh.pop %v216
    %v228 = vmul.f32 %v225, 0.0
    %v229 = vmul.f32 %v225, %v227
    %231 = vrot.lane.b32.xlu0 %v229, 64
    %v232 = vpop.permute.xlu0 %231
    %v234 = vadd.f32 %v228, %v232
    %v235 = vtanh.pop %v234
    %v236 = vmul.f32 %v226, %v235
    %v237 = vpack.c.bf16 %v236, %v236
    %v239 = vsel %vm170, %v237, 0
    %241 = vmatprep.subr.bf16.mxu0 0
    %242 = vmatpush1.bf16.msra.mxu0 0
    %243 = vmatprep.subr.bf16.mxu0 0
    %244 = vmatpush1.bf16.msra.mxu0 0
    %245 = vmatprep.subr.bf16.mxu0 0
    %246 = vmatpush1.bf16.msra.mxu0 0
    %247 = vmatprep.subr.bf16.mxu0 0
    %248 = vmatpush1.bf16.msra.mxu0 0
    %249 = vmatprep.subr.bf16.mxu0 %v161
    %250 = vmatpush1.bf16.msra.mxu0 %v160
    %251 = vmatprep.subr.bf16.mxu0 %v159
    %252 = vmatpush1.bf16.msra.mxu0 %v158
    %253 = vmatprep.subr.bf16.mxu0 %v157
    %254 = vmatpush1.bf16.msra.mxu0 %v156
    %255 = vmatprep.subr.bf16.mxu0 %v155
    %256 = vmatpush1.bf16.msra.mxu0 %v154
    %257 = vmatprep.subr.bf16.mxu0 0
    %258 = vmatpush2.bf16.msra.mxu0 0
    %259 = vmatprep.subr.bf16.mxu0 0
    %260 = vmatpush2.bf16.msra.mxu0 0
    %261 = vmatprep.subr.bf16.mxu0 0
    %262 = vmatpush2.bf16.msra.mxu0 0
    %263 = vmatprep.subr.bf16.mxu0 0
    %264 = vmatpush2.bf16.msra.mxu0 0
    %265 = vmatprep.subr.bf16.mxu0 0
    %266 = vmatpush2.bf16.msra.mxu0 0
    %267 = vmatprep.subr.bf16.mxu0 0
    %268 = vmatpush2.bf16.msra.mxu0 0
    %269 = vmatprep.subr.bf16.mxu0 0
    %270 = vmatpush2.bf16.msra.mxu0 0
    %271 = vmatprep.subr.bf16.mxu0 0
    %272 = vmatpush2.bf16.msra.mxu0 0
    %273 = vmatprep.mubr.bf16.mxu0 0
    %274 = vmatmul.mubr.bf16.gmra.mxu0 %v239
    %v275 = vpop.f32.mrf.mxu0
    %v276 = vadd.f32 0.0, %v275
    %v277 = vpop.f32.mrf.mxu0
    %v278 = vadd.f32 0.0, %v277
    %v279 = vpop.f32.mrf.mxu0
    %v280 = vpop.f32.mrf.mxu0
    %281 = vdwg.mxu0
    %v284 = vrot.slane %v276, 7
    %v285 = vrot.slane %v278, 7
    %v288 = vadd.f32 %v116, %v284
    %v289 = vadd.f32 %v118, %v285
    %v290 = vsub.f32 0.0, %v288
    %v291 = vsub.f32 0.0, %v289
    %v292 = vmul.f32 %v290, 1.442695
    %v293 = vpow.pop %v292
    %v294 = vmul.f32 %v291, 1.442695
    %v295 = vpow.pop %v294
    %v296 = vadd.f32 %v293, 1.0
    %v297 = vadd.f32 %v295, 1.0
    %v298 = vrcp.pop %v296
    %v299 = vrcp.pop %v297
    %v300 = vtanh.pop %v289
    %v302 = vrot.slane %v234, 7
    %v304 = vmul.f32 %v298, %v302
    %v305 = vmul.f32 %v298, %v300
    %307 = vrot.lane.b32.xlu0 %v305, 64
    %v308 = vpop.permute.xlu0 %307
    %v310 = vadd.f32 %v304, %v308
    %v311 = vtanh.pop %v310
    %v312 = vmul.f32 %v299, %v311
    %v313 = vpack.c.bf16 %v312, %v312
    %v315 = vshrl.u32 %v313, 16
    %v318 = vsel %vm170, %v315, 0
    %320 = vmatprep.subr.bf16.mxu0 0
    %321 = vmatpush1.bf16.msra.mxu0 0
    %322 = vmatprep.subr.bf16.mxu0 0
    %323 = vmatpush1.bf16.msra.mxu0 0
    %324 = vmatprep.subr.bf16.mxu0 0
    %325 = vmatpush1.bf16.msra.mxu0 0
    %326 = vmatprep.subr.bf16.mxu0 0
    %327 = vmatpush1.bf16.msra.mxu0 0
    %328 = vmatprep.subr.bf16.mxu0 %v161
    %329 = vmatpush1.bf16.msra.mxu0 %v160
    %330 = vmatprep.subr.bf16.mxu0 %v159
    %331 = vmatpush1.bf16.msra.mxu0 %v158
    %332 = vmatprep.subr.bf16.mxu0 %v157
    %333 = vmatpush1.bf16.msra.mxu0 %v156
    %334 = vmatprep.subr.bf16.mxu0 %v155
    %335 = vmatpush1.bf16.msra.mxu0 %v154
    %336 = vmatprep.subr.bf16.mxu0 0
    %337 = vmatpush2.bf16.msra.mxu0 0
    %338 = vmatprep.subr.bf16.mxu0 0
    %339 = vmatpush2.bf16.msra.mxu0 0
    %340 = vmatprep.subr.bf16.mxu0 0
    %341 = vmatpush2.bf16.msra.mxu0 0
    %342 = vmatprep.subr.bf16.mxu0 0
    %343 = vmatpush2.bf16.msra.mxu0 0
    %344 = vmatprep.subr.bf16.mxu0 0
    %345 = vmatpush2.bf16.msra.mxu0 0
    %346 = vmatprep.subr.bf16.mxu0 0
    %347 = vmatpush2.bf16.msra.mxu0 0
    %348 = vmatprep.subr.bf16.mxu0 0
    %349 = vmatpush2.bf16.msra.mxu0 0
    %350 = vmatprep.subr.bf16.mxu0 0
    %351 = vmatpush2.bf16.msra.mxu0 0
    %352 = vmatprep.mubr.bf16.mxu0 0
    %353 = vmatmul.mubr.bf16.gmra.mxu0 %v318
    %v354 = vpop.f32.mrf.mxu0
    %v355 = vadd.f32 0.0, %v354
    %v356 = vpop.f32.mrf.mxu0
    %v357 = vadd.f32 0.0, %v356
    %v358 = vpop.f32.mrf.mxu0
    %v359 = vpop.f32.mrf.mxu0
    %360 = vdwg.mxu0
    %v363 = vrot.slane %v355, 6
    %v364 = vrot.slane %v357, 6
    %v367 = vadd.f32 %v116, %v363
    %v368 = vadd.f32 %v118, %v364
    %v369 = vsub.f32 0.0, %v367
    %v370 = vsub.f32 0.0, %v368
    %v371 = vmul.f32 %v369, 1.442695
    %v372 = vpow.pop %v371
    %v373 = vmul.f32 %v370, 1.442695
    %v374 = vpow.pop %v373
    %v375 = vadd.f32 %v372, 1.0
    %v376 = vadd.f32 %v374, 1.0
    %v377 = vrcp.pop %v375
    %v378 = vrcp.pop %v376
    %v379 = vtanh.pop %v368
    %v381 = vrot.slane %v310, 7
    %v383 = vmul.f32 %v377, %v381
    %v384 = vmul.f32 %v377, %v379
    %386 = vrot.lane.b32.xlu0 %v384, 64
    %v387 = vpop.permute.xlu0 %386
    %v389 = vadd.f32 %v383, %v387
    %v390 = vtanh.pop %v389
    %v391 = vmul.f32 %v378, %v390
    %v392 = vpack.c.bf16 %v391, %v391
    %v394 = vrot.slane %v392, 1
    %v396 = vsel %vm170, %v394, 0
    %398 = vmatprep.subr.bf16.mxu0 0
    %399 = vmatpush1.bf16.msra.mxu0 0
    %400 = vmatprep.subr.bf16.mxu0 0
    %401 = vmatpush1.bf16.msra.mxu0 0
    %402 = vmatprep.subr.bf16.mxu0 0
    %403 = vmatpush1.bf16.msra.mxu0 0
    %404 = vmatprep.subr.bf16.mxu0 0
    %405 = vmatpush1.bf16.msra.mxu0 0
    %406 = vmatprep.subr.bf16.mxu0 %v161
    %407 = vmatpush1.bf16.msra.mxu0 %v160
    %408 = vmatprep.subr.bf16.mxu0 %v159
    %409 = vmatpush1.bf16.msra.mxu0 %v158
    %410 = vmatprep.subr.bf16.mxu0 %v157
    %411 = vmatpush1.bf16.msra.mxu0 %v156
    %412 = vmatprep.subr.bf16.mxu0 %v155
    %413 = vmatpush1.bf16.msra.mxu0 %v154
    %414 = vmatprep.subr.bf16.mxu0 0
    %415 = vmatpush2.bf16.msra.mxu0 0
    %416 = vmatprep.subr.bf16.mxu0 0
    %417 = vmatpush2.bf16.msra.mxu0 0
    %418 = vmatprep.subr.bf16.mxu0 0
    %419 = vmatpush2.bf16.msra.mxu0 0
    %420 = vmatprep.subr.bf16.mxu0 0
    %421 = vmatpush2.bf16.msra.mxu0 0
    %422 = vmatprep.subr.bf16.mxu0 0
    %423 = vmatpush2.bf16.msra.mxu0 0
    %424 = vmatprep.subr.bf16.mxu0 0
    %425 = vmatpush2.bf16.msra.mxu0 0
    %426 = vmatprep.subr.bf16.mxu0 0
    %427 = vmatpush2.bf16.msra.mxu0 0
    %428 = vmatprep.subr.bf16.mxu0 0
    %429 = vmatpush2.bf16.msra.mxu0 0
    %430 = vmatprep.mubr.bf16.mxu0 0
    %431 = vmatmul.mubr.bf16.gmra.mxu0 %v396
    %v432 = vpop.f32.mrf.mxu0
    %v433 = vadd.f32 0.0, %v432
    %v434 = vpop.f32.mrf.mxu0
    %v435 = vadd.f32 0.0, %v434
    %v436 = vpop.f32.mrf.mxu0
    %v437 = vpop.f32.mrf.mxu0
    %438 = vdwg.mxu0
    %v441 = vrot.slane %v433, 5
    %v442 = vrot.slane %v435, 5
    %v445 = vadd.f32 %v116, %v441
    %v446 = vadd.f32 %v118, %v442
    %v447 = vsub.f32 0.0, %v445
    %v448 = vsub.f32 0.0, %v446
    %v449 = vmul.f32 %v447, 1.442695
    %v450 = vpow.pop %v449
    %v451 = vmul.f32 %v448, 1.442695
    %v452 = vpow.pop %v451
    %v453 = vadd.f32 %v450, 1.0
    %v454 = vadd.f32 %v452, 1.0
    %v455 = vrcp.pop %v453
    %v456 = vrcp.pop %v454
    %v457 = vtanh.pop %v446
    %v459 = vrot.slane %v389, 7
    %v461 = vmul.f32 %v455, %v459
    %v462 = vmul.f32 %v455, %v457
    %464 = vrot.lane.b32.xlu0 %v462, 64
    %v465 = vpop.permute.xlu0 %464
    %v467 = vadd.f32 %v461, %v465
    %v468 = vtanh.pop %v467
    %v469 = vmul.f32 %v456, %v468
    %v470 = vpack.c.bf16 %v469, %v469
    %v472 = vshrl.u32 %v470, 16
    %v474 = vrot.slane %v472, 1
    %v476 = vsel %vm170, %v474, 0
    %478 = vmatprep.subr.bf16.mxu0 0
    %479 = vmatpush1.bf16.msra.mxu0 0
    %480 = vmatprep.subr.bf16.mxu0 0
    %481 = vmatpush1.bf16.msra.mxu0 0
    %482 = vmatprep.subr.bf16.mxu0 0
    %483 = vmatpush1.bf16.msra.mxu0 0
    %484 = vmatprep.subr.bf16.mxu0 0
    %485 = vmatpush1.bf16.msra.mxu0 0
    %486 = vmatprep.subr.bf16.mxu0 %v161
    %487 = vmatpush1.bf16.msra.mxu0 %v160
    %488 = vmatprep.subr.bf16.mxu0 %v159
    %489 = vmatpush1.bf16.msra.mxu0 %v158
    %490 = vmatprep.subr.bf16.mxu0 %v157
    %491 = vmatpush1.bf16.msra.mxu0 %v156
    %492 = vmatprep.subr.bf16.mxu0 %v155
    %493 = vmatpush1.bf16.msra.mxu0 %v154
    %494 = vmatprep.subr.bf16.mxu0 0
    %495 = vmatpush2.bf16.msra.mxu0 0
    %496 = vmatprep.subr.bf16.mxu0 0
    %497 = vmatpush2.bf16.msra.mxu0 0
    %498 = vmatprep.subr.bf16.mxu0 0
    %499 = vmatpush2.bf16.msra.mxu0 0
    %500 = vmatprep.subr.bf16.mxu0 0
    %501 = vmatpush2.bf16.msra.mxu0 0
    %502 = vmatprep.subr.bf16.mxu0 0
    %503 = vmatpush2.bf16.msra.mxu0 0
    %504 = vmatprep.subr.bf16.mxu0 0
    %505 = vmatpush2.bf16.msra.mxu0 0
    %506 = vmatprep.subr.bf16.mxu0 0
    %507 = vmatpush2.bf16.msra.mxu0 0
    %508 = vmatprep.subr.bf16.mxu0 0
    %509 = vmatpush2.bf16.msra.mxu0 0
    %510 = vmatprep.mubr.bf16.mxu0 0
    %511 = vmatmul.mubr.bf16.gmra.mxu0 %v476
    %v512 = vpop.f32.mrf.mxu0
    %v513 = vadd.f32 0.0, %v512
    %v514 = vpop.f32.mrf.mxu0
    %v515 = vadd.f32 0.0, %v514
    %v516 = vpop.f32.mrf.mxu0
    %v517 = vpop.f32.mrf.mxu0
    %518 = vdwg.mxu0
    %v521 = vrot.slane %v513, 4
    %v522 = vrot.slane %v515, 4
    %v525 = vadd.f32 %v116, %v521
    %v526 = vadd.f32 %v118, %v522
    %v527 = vsub.f32 0.0, %v525
    %v528 = vsub.f32 0.0, %v526
    %v529 = vmul.f32 %v527, 1.442695
    %v530 = vpow.pop %v529
    %v531 = vmul.f32 %v528, 1.442695
    %v532 = vpow.pop %v531
    %v533 = vadd.f32 %v530, 1.0
    %v534 = vadd.f32 %v532, 1.0
    %v535 = vrcp.pop %v533
    %v536 = vrcp.pop %v534
    %v537 = vtanh.pop %v526
    %v539 = vrot.slane %v467, 7
    %v541 = vmul.f32 %v535, %v539
    %v542 = vmul.f32 %v535, %v537
    %544 = vrot.lane.b32.xlu0 %v542, 64
    %v545 = vpop.permute.xlu0 %544
    %v547 = vadd.f32 %v541, %v545
    %v548 = vtanh.pop %v547
    %v549 = vmul.f32 %v536, %v548
    %v550 = vpack.c.bf16 %v549, %v549
    %v552 = vrot.slane %v550, 2
    %v554 = vsel %vm170, %v552, 0
    %556 = vmatprep.subr.bf16.mxu0 0
    %557 = vmatpush1.bf16.msra.mxu0 0
    %558 = vmatprep.subr.bf16.mxu0 0
    %559 = vmatpush1.bf16.msra.mxu0 0
    %560 = vmatprep.subr.bf16.mxu0 0
    %561 = vmatpush1.bf16.msra.mxu0 0
    %562 = vmatprep.subr.bf16.mxu0 0
    %563 = vmatpush1.bf16.msra.mxu0 0
    %564 = vmatprep.subr.bf16.mxu0 %v161
    %565 = vmatpush1.bf16.msra.mxu0 %v160
    %566 = vmatprep.subr.bf16.mxu0 %v159
    %567 = vmatpush1.bf16.msra.mxu0 %v158
    %568 = vmatprep.subr.bf16.mxu0 %v157
    %569 = vmatpush1.bf16.msra.mxu0 %v156
    %570 = vmatprep.subr.bf16.mxu0 %v155
    %571 = vmatpush1.bf16.msra.mxu0 %v154
    %572 = vmatprep.subr.bf16.mxu0 0
    %573 = vmatpush2.bf16.msra.mxu0 0
    %574 = vmatprep.subr.bf16.mxu0 0
    %575 = vmatpush2.bf16.msra.mxu0 0
    %576 = vmatprep.subr.bf16.mxu0 0
    %577 = vmatpush2.bf16.msra.mxu0 0
    %578 = vmatprep.subr.bf16.mxu0 0
    %579 = vmatpush2.bf16.msra.mxu0 0
    %580 = vmatprep.subr.bf16.mxu0 0
    %581 = vmatpush2.bf16.msra.mxu0 0
    %582 = vmatprep.subr.bf16.mxu0 0
    %583 = vmatpush2.bf16.msra.mxu0 0
    %584 = vmatprep.subr.bf16.mxu0 0
    %585 = vmatpush2.bf16.msra.mxu0 0
    %586 = vmatprep.subr.bf16.mxu0 0
    %587 = vmatpush2.bf16.msra.mxu0 0
    %588 = vmatprep.mubr.bf16.mxu0 0
    %589 = vmatmul.mubr.bf16.gmra.mxu0 %v554
    %v590 = vpop.f32.mrf.mxu0
    %v591 = vadd.f32 0.0, %v590
    %v592 = vpop.f32.mrf.mxu0
    %v593 = vadd.f32 0.0, %v592
    %v594 = vpop.f32.mrf.mxu0
    %v595 = vpop.f32.mrf.mxu0
    %596 = vdwg.mxu0
    %v599 = vrot.slane %v591, 3
    %v600 = vrot.slane %v593, 3
    %v603 = vadd.f32 %v116, %v599
    %v604 = vadd.f32 %v118, %v600
    %v605 = vsub.f32 0.0, %v603
    %v606 = vsub.f32 0.0, %v604
    %v607 = vmul.f32 %v605, 1.442695
    %v608 = vpow.pop %v607
    %v609 = vmul.f32 %v606, 1.442695
    %v610 = vpow.pop %v609
    %v611 = vadd.f32 %v608, 1.0
    %v612 = vadd.f32 %v610, 1.0
    %v613 = vrcp.pop %v611
    %v614 = vrcp.pop %v612
    %v615 = vtanh.pop %v604
    %v617 = vrot.slane %v547, 7
    %v619 = vmul.f32 %v613, %v617
    %v620 = vmul.f32 %v613, %v615
    %622 = vrot.lane.b32.xlu0 %v620, 64
    %v623 = vpop.permute.xlu0 %622
    %v625 = vadd.f32 %v619, %v623
    %v626 = vtanh.pop %v625
    %v627 = vmul.f32 %v614, %v626
    %v628 = vpack.c.bf16 %v627, %v627
    %v630 = vshrl.u32 %v628, 16
    %v632 = vrot.slane %v630, 2
    %v634 = vsel %vm170, %v632, 0
    %636 = vmatprep.subr.bf16.mxu0 0
    %637 = vmatpush1.bf16.msra.mxu0 0
    %638 = vmatprep.subr.bf16.mxu0 0
    %639 = vmatpush1.bf16.msra.mxu0 0
    %640 = vmatprep.subr.bf16.mxu0 0
    %641 = vmatpush1.bf16.msra.mxu0 0
    %642 = vmatprep.subr.bf16.mxu0 0
    %643 = vmatpush1.bf16.msra.mxu0 0
    %644 = vmatprep.subr.bf16.mxu0 %v161
    %645 = vmatpush1.bf16.msra.mxu0 %v160
    %646 = vmatprep.subr.bf16.mxu0 %v159
    %647 = vmatpush1.bf16.msra.mxu0 %v158
    %648 = vmatprep.subr.bf16.mxu0 %v157
    %649 = vmatpush1.bf16.msra.mxu0 %v156
    %650 = vmatprep.subr.bf16.mxu0 %v155
    %651 = vmatpush1.bf16.msra.mxu0 %v154
    %652 = vmatprep.subr.bf16.mxu0 0
    %653 = vmatpush2.bf16.msra.mxu0 0
    %654 = vmatprep.subr.bf16.mxu0 0
    %655 = vmatpush2.bf16.msra.mxu0 0
    %656 = vmatprep.subr.bf16.mxu0 0
    %657 = vmatpush2.bf16.msra.mxu0 0
    %658 = vmatprep.subr.bf16.mxu0 0
    %659 = vmatpush2.bf16.msra.mxu0 0
    %660 = vmatprep.subr.bf16.mxu0 0
    %661 = vmatpush2.bf16.msra.mxu0 0
    %662 = vmatprep.subr.bf16.mxu0 0
    %663 = vmatpush2.bf16.msra.mxu0 0
    %664 = vmatprep.subr.bf16.mxu0 0
    %665 = vmatpush2.bf16.msra.mxu0 0
    %666 = vmatprep.subr.bf16.mxu0 0
    %667 = vmatpush2.bf16.msra.mxu0 0
    %668 = vmatprep.mubr.bf16.mxu0 0
    %669 = vmatmul.mubr.bf16.gmra.mxu0 %v634
    %v670 = vpop.f32.mrf.mxu0
    %v671 = vadd.f32 0.0, %v670
    %v672 = vpop.f32.mrf.mxu0
    %v673 = vadd.f32 0.0, %v672
    %v674 = vpop.f32.mrf.mxu0
    %v675 = vpop.f32.mrf.mxu0
    %676 = vdwg.mxu0
    %v679 = vrot.slane %v671, 2
    %v680 = vrot.slane %v673, 2
    %v683 = vadd.f32 %v116, %v679
    %v684 = vadd.f32 %v118, %v680
    %v685 = vsub.f32 0.0, %v683
    %v686 = vsub.f32 0.0, %v684
    %v687 = vmul.f32 %v685, 1.442695
    %v688 = vpow.pop %v687
    %v689 = vmul.f32 %v686, 1.442695
    %v690 = vpow.pop %v689
    %v691 = vadd.f32 %v688, 1.0
    %v692 = vadd.f32 %v690, 1.0
    %v693 = vrcp.pop %v691
    %v694 = vrcp.pop %v692
    %v695 = vtanh.pop %v684
    %v697 = vrot.slane %v625, 7
    %v699 = vmul.f32 %v693, %v697
    %v700 = vmul.f32 %v693, %v695
    %702 = vrot.lane.b32.xlu0 %v700, 64
    %v703 = vpop.permute.xlu0 %702
    %v705 = vadd.f32 %v699, %v703
    %v706 = vtanh.pop %v705
    %v707 = vmul.f32 %v694, %v706
    %v708 = vpack.c.bf16 %v707, %v707
    %v710 = vrot.slane %v708, 3
    %v712 = vsel %vm170, %v710, 0
    %714 = vmatprep.subr.bf16.mxu0 0
    %715 = vmatpush1.bf16.msra.mxu0 0
    %716 = vmatprep.subr.bf16.mxu0 0
    %717 = vmatpush1.bf16.msra.mxu0 0
    %718 = vmatprep.subr.bf16.mxu0 0
    %719 = vmatpush1.bf16.msra.mxu0 0
    %720 = vmatprep.subr.bf16.mxu0 0
    %721 = vmatpush1.bf16.msra.mxu0 0
    %722 = vmatprep.subr.bf16.mxu0 %v161
    %723 = vmatpush1.bf16.msra.mxu0 %v160
    %724 = vmatprep.subr.bf16.mxu0 %v159
    %725 = vmatpush1.bf16.msra.mxu0 %v158
    %726 = vmatprep.subr.bf16.mxu0 %v157
    %727 = vmatpush1.bf16.msra.mxu0 %v156
    %728 = vmatprep.subr.bf16.mxu0 %v155
    %729 = vmatpush1.bf16.msra.mxu0 %v154
    %730 = vmatprep.subr.bf16.mxu0 0
    %731 = vmatpush2.bf16.msra.mxu0 0
    %732 = vmatprep.subr.bf16.mxu0 0
    %733 = vmatpush2.bf16.msra.mxu0 0
    %734 = vmatprep.subr.bf16.mxu0 0
    %735 = vmatpush2.bf16.msra.mxu0 0
    %736 = vmatprep.subr.bf16.mxu0 0
    %737 = vmatpush2.bf16.msra.mxu0 0
    %738 = vmatprep.subr.bf16.mxu0 0
    %739 = vmatpush2.bf16.msra.mxu0 0
    %740 = vmatprep.subr.bf16.mxu0 0
    %741 = vmatpush2.bf16.msra.mxu0 0
    %742 = vmatprep.subr.bf16.mxu0 0
    %743 = vmatpush2.bf16.msra.mxu0 0
    %744 = vmatprep.subr.bf16.mxu0 0
    %745 = vmatpush2.bf16.msra.mxu0 0
    %746 = vmatprep.mubr.bf16.mxu0 0
    %747 = vmatmul.mubr.bf16.gmra.mxu0 %v712
    %v748 = vpop.f32.mrf.mxu0
    %v749 = vadd.f32 0.0, %v748
    %v750 = vpop.f32.mrf.mxu0
    %v751 = vadd.f32 0.0, %v750
    %v752 = vpop.f32.mrf.mxu0
    %v753 = vpop.f32.mrf.mxu0
    %754 = vdwg.mxu0
    %v757 = vrot.slane %v749, 1
    %v758 = vrot.slane %v751, 1
    %v761 = vadd.f32 %v116, %v757
    %v762 = vadd.f32 %v118, %v758
    %v763 = vsub.f32 0.0, %v761
    %v764 = vsub.f32 0.0, %v762
    %v765 = vmul.f32 %v763, 1.442695
    %v766 = vpow.pop %v765
    %v767 = vmul.f32 %v764, 1.442695
    %v768 = vpow.pop %v767
    %v769 = vadd.f32 %v766, 1.0
    %v770 = vadd.f32 %v768, 1.0
    %v771 = vrcp.pop %v769
    %v772 = vrcp.pop %v770
    %v773 = vtanh.pop %v762
    %v775 = vrot.slane %v705, 7
    %v777 = vmul.f32 %v771, %v775
    %v778 = vmul.f32 %v771, %v773
    %780 = vrot.lane.b32.xlu0 %v778, 64
    %v781 = vpop.permute.xlu0 %780
    %v783 = vadd.f32 %v777, %v781
    %v784 = vtanh.pop %v783
    %v785 = vmul.f32 %v772, %v784
    %vm786 = vcmask 1040384
    %v787 = vsel %vm786, %v236, %v312
    %vm788 = vcmask 1041408
    %v789 = vsel %vm788, %v787, %v391
    %vm790 = vcmask 1042432
    %v791 = vsel %vm790, %v789, %v469
    %vm792 = vcmask 1043456
    %v793 = vsel %vm792, %v791, %v549
    %vm794 = vcmask 1044480
    %v795 = vsel %vm794, %v793, %v627
    %vm796 = vcmask 1045504
    %v797 = vsel %vm796, %v795, %v707
    %vm798 = vcmask 1046528
    %v799 = vsel %vm798, %v797, %v785
    %v801 = vrot.slane %v785, 7
    %v804 = vrot.slane %v707, 5
    %v807 = vrot.slane %v627, 3
    %v810 = vrot.slane %v549, 1
    %v813 = vrot.slane %v469, 7
    %v816 = vrot.slane %v391, 5
    %v819 = vrot.slane %v312, 3
    %v822 = vrot.slane %v236, 1
    %v824 = vsel %vm786, %v801, %v804
    %v825 = vsel %vm788, %v824, %v807
    %v826 = vsel %vm790, %v825, %v810
    %v827 = vsel %vm792, %v826, %v813
    %v828 = vsel %vm794, %v827, %v816
    %v829 = vsel %vm796, %v828, %v819
    %v830 = vsel %vm798, %v829, %v822
    %832 = vrot.lane.b32.xlu0 %v830, 64
    %v833 = vpop.permute.xlu0 %832
    %v835 = vsel %vm170, %v799, %v833
    %v836 = vpack.c.bf16 %v835, %v835
    %v837 = vld [vmem:[%s4] sm:$0xf]
    %v838 = vld [vmem:[%s4 + $0x4] sm:$0xf]
    %v839 = vld [vmem:[%s4 + $0x8] sm:$0xf]
    %v840 = vld [vmem:[%s4 + $0xc] sm:$0xf]
    %v841 = vld [vmem:[%s4 + $0x10] sm:$0xf]
    %v842 = vld [vmem:[%s4 + $0x14] sm:$0xf]
    %v843 = vld [vmem:[%s4 + $0x18] sm:$0xf]
    %v844 = vld [vmem:[%s4 + $0x1c] sm:$0xf]
    %v845 = vld [vmem:[%s4 + $0x20] sm:$0xf]
    %v846 = vld [vmem:[%s4 + $0x24] sm:$0xf]
    %v847 = vld [vmem:[%s4 + $0x28] sm:$0xf]
    %v848 = vld [vmem:[%s4 + $0x2c] sm:$0xf]
    %v849 = vld [vmem:[%s4 + $0x30] sm:$0xf]
    %v850 = vld [vmem:[%s4 + $0x34] sm:$0xf]
    %v851 = vld [vmem:[%s4 + $0x38] sm:$0xf]
    %v852 = vld [vmem:[%s4 + $0x3c] sm:$0xf]
    %v853 = vld [vmem:[#allocation2] sm:$0x1]
    %v855 = vlaneseq
    %v856 = vshrl.u32 %v855, 7
    %v857 = vsub.s32 0, %v856
    %v858 = vrot.slane %v853, %v857
    %v876 = vunpack.c.l.b16 %v837
    %v877 = vunpack.c.l.b16 %v838
    %v878 = vunpack.c.l.b16 %v839
    %v879 = vunpack.c.l.b16 %v840
    %v880 = vunpack.c.l.b16 %v841
    %v881 = vunpack.c.l.b16 %v842
    %v882 = vunpack.c.l.b16 %v843
    %v883 = vunpack.c.l.b16 %v844
    %v884 = vunpack.c.l.b16 %v845
    %v885 = vunpack.c.l.b16 %v846
    %v886 = vunpack.c.l.b16 %v847
    %v887 = vunpack.c.l.b16 %v848
    %v888 = vunpack.c.l.b16 %v849
    %v889 = vunpack.c.l.b16 %v850
    %v890 = vunpack.c.l.b16 %v851
    %v891 = vunpack.c.l.b16 %v852
    %v892 = vpack.c.b16 %v877, %v876
    %v893 = vpack.c.b16 %v879, %v878
    %v894 = vpack.c.b16 %v881, %v880
    %v895 = vpack.c.b16 %v883, %v882
    %v896 = vpack.c.b16 %v885, %v884
    %v897 = vpack.c.b16 %v887, %v886
    %v898 = vpack.c.b16 %v889, %v888
    %v899 = vpack.c.b16 %v891, %v890
    %908 = vmatprep.subr.bf16.mxu0 0
    %909 = vmatpush1.bf16.msra.mxu0 %v899
    %910 = vmatprep.subr.bf16.mxu0 0
    %911 = vmatpush1.bf16.msra.mxu0 %v898
    %912 = vmatprep.subr.bf16.mxu0 0
    %913 = vmatpush1.bf16.msra.mxu0 %v897
    %914 = vmatprep.subr.bf16.mxu0 0
    %915 = vmatpush1.bf16.msra.mxu0 %v896
    %916 = vmatprep.subr.bf16.mxu0 0
    %917 = vmatpush1.bf16.msra.mxu0 %v895
    %918 = vmatprep.subr.bf16.mxu0 0
    %919 = vmatpush1.bf16.msra.mxu0 %v894
    %920 = vmatprep.subr.bf16.mxu0 0
    %921 = vmatpush1.bf16.msra.mxu0 %v893
    %922 = vmatprep.subr.bf16.mxu0 0
    %923 = vmatpush1.bf16.msra.mxu0 %v892
    %924 = vmatprep.subr.bf16.mxu0 0
    %925 = vmatpush2.bf16.msra.mxu0 0
    %926 = vmatprep.subr.bf16.mxu0 0
    %927 = vmatpush2.bf16.msra.mxu0 0
    %928 = vmatprep.subr.bf16.mxu0 0
    %929 = vmatpush2.bf16.msra.mxu0 0
    %930 = vmatprep.subr.bf16.mxu0 0
    %931 = vmatpush2.bf16.msra.mxu0 0
    %932 = vmatprep.subr.bf16.mxu0 0
    %933 = vmatpush2.bf16.msra.mxu0 0
    %934 = vmatprep.subr.bf16.mxu0 0
    %935 = vmatpush2.bf16.msra.mxu0 0
    %936 = vmatprep.subr.bf16.mxu0 0
    %937 = vmatpush2.bf16.msra.mxu0 0
    %938 = vmatprep.subr.bf16.mxu0 0
    %939 = vmatpush2.bf16.msra.mxu0 0
    %940 = vmatprep.mubr.bf16.mxu0 0
    %941 = vmatmul.mubr.bf16.gmra.mxu0 %v836
    %v942 = vpop.f32.mrf.mxu0
    %v943 = vadd.f32 %v858, %v942
    %v944 = vpop.f32.mrf.mxu0
    %v945 = vpop.f32.mrf.mxu0
    %v946 = vpop.f32.mrf.mxu0
    %947 = vdwg.mxu0
    %v948 = vsub.f32 0.0, %v943
    %v949 = vmul.f32 %v948, 1.442695
    %v950 = vpow.pop %v949
    %v951 = vadd.f32 %v950, 1.0
    %v952 = vrcp.pop %v951
    %vm953 = vcmask 7168
    %954 = vst.msk [vmem:[%s6] sm:$0xff] %vm953, %v952
    // Predicated region
    $region30: #{tpu_custom_call.1} parent=1 // pred_check
      _
    $region31: #{tpu_custom_call.1} parent=1 // pred_check_branch
      %956 = sbr.rel (0) target = $region33
    $region32: #{tpu_custom_call.1} parent=1 // pred_region
      _
    $region33: #{tpu_custom_call.1} parent=1 // pred_fallthru
      _
    // Predicated region
    $region34: #{tpu_custom_call.1} parent=1 // pred_check
      _
    $region35: #{tpu_custom_call.1} parent=1 // pred_check_branch
      %958 = sbr.rel (0) target = $region37
    $region36: #{tpu_custom_call.1} parent=1 // pred_region
      _
    $region37: #{tpu_custom_call.1} parent=1 // pred_fallthru
      _
    %959 = vsyncpa [#allocation4], 1

</llo_original>
